<compile_context>
chip_gen: v7x
topology: tpu7x:2x2x1
jax: 0.10.0
libtpu: 0.0.40
codegen_flags: <defaults>
</compile_context>

<pallas_src>
import functools

import jax
import jax.numpy as jnp
from jax.experimental import pallas as pl
from jax.experimental.pallas import tpu as pltpu

_LANES = 128            # lane width of a vreg
_SUBLANES = 8           # sublane count of a vreg
_TILE_R = 2048          # rows per block in the tiled path (2048x128 f32 = 1 MiB)
_SMALL_ROWS = 2048      # <= this many rows -> single-block, grid-less path (<= 1 MiB)


def _tanh3x_kernel(x_ref, o_ref):
    # t0 = x + x ; t1 = t0 + x  ==  3 * x  (single vmul; tanh on EUP)
    o_ref[...] = jnp.tanh(3.0 * x_ref[...])


def _run_small(x_view):
    # Whole (rows, 128) slab is one VMEM-resident block: no grid, no
    # pipelining machinery, no per-step overhead.
    return pl.pallas_call(
        _tanh3x_kernel,
        out_shape=jax.ShapeDtypeStruct(x_view.shape, x_view.dtype),
        in_specs=[pl.BlockSpec(memory_space=pltpu.MemorySpace.VMEM)],
        out_specs=pl.BlockSpec(memory_space=pltpu.MemorySpace.VMEM),
        input_output_aliases={0: 0},
    )(x_view)


def _run_tiled(x_view):
    rows, lanes = x_view.shape
    grid = (pl.cdiv(rows, _TILE_R),)  # partial last block handled by Pallas
    return pl.pallas_call(
        _tanh3x_kernel,
        out_shape=jax.ShapeDtypeStruct((rows, lanes), x_view.dtype),
        grid=grid,
        in_specs=[pl.BlockSpec((_TILE_R, lanes), lambda i: (i, 0))],
        out_specs=pl.BlockSpec((_TILE_R, lanes), lambda i: (i, 0)),
        compiler_params=pltpu.CompilerParams(
            dimension_semantics=("parallel",),
            vmem_limit_bytes=32 * 1024 * 1024,
        ),
        # Purely elementwise: reuse the (jit-local) input buffer for the output.
        input_output_aliases={0: 0},
    )(x_view)


@functools.partial(jax.jit, static_argnames=())
def model_forward(x):
    """Reproduces Model.forward for a 2-D input x of shape (s, d)."""
    s, d = x.shape
    # torch.reshape(t1, (s/d, d)) is only element-count preserving when d == 1.
    assert s % d == 0 and (s // d) * d == s * d, (
        "reshape to (s/d, d) requires d == 1 for consistent element counts"
    )

    n = s * d
    flat = x.reshape(-1)

    # Pad only to one vreg (8x128 elements): lane- and sublane-dense, no
    # whole-tile padding (Pallas masks the partial last block in the grid).
    vreg_elems = _SUBLANES * _LANES
    n_pad = ((n + vreg_elems - 1) // vreg_elems) * vreg_elems
    if n_pad != n:
        flat = jnp.pad(flat, (0, n_pad - n))
    rows = n_pad // _LANES
    x_view = flat.reshape(rows, _LANES)

    if rows <= _SMALL_ROWS:
        out_view = _run_small(x_view)
    else:
        out_view = _run_tiled(x_view)

    out_flat = out_view.reshape(-1)
    if n_pad != n:
        out_flat = out_flat[:n]
    # Final reshape to (s / d, d), matching torch.reshape(t1, shape).
    return out_flat.reshape(s // d, d)


if __name__ == "__main__":
    key = jax.random.PRNGKey(0)

    # Primary (small) configuration: d must be 1 for the module's reshape.
    s, d = 1024, 1
    x = jax.random.normal(key, (s, d), dtype=jnp.float32)
    out = jax.block_until_ready(model_forward(x))
    ref = jnp.tanh(3.0 * x).reshape(s // d, d)
    assert out.shape == (s // d, d)
    assert jnp.allclose(out, ref, atol=1e-6, rtol=1e-6)

    # Exercise the row-tiled path (partial last block, ~1.2 MiB f32, grid = 2).
    s2 = 300_000
    x2 = jax.random.normal(jax.random.PRNGKey(1), (s2, 1), dtype=jnp.float32)
    out2 = jax.block_until_ready(model_forward(x2))
    ref2 = jnp.tanh(3.0 * x2)
    assert out2.shape == (s2, 1)
    assert jnp.allclose(out2, ref2, atol=1e-6, rtol=1e-6)

    print("KERNEL_OK")
</pallas_src>

<mosaic_0001>
module attributes {stable_mosaic.version = 11 : i64} {
  func.func @_tanh3x_kernel(%arg0: memref<8x128xf32, #tpu.memory_space<vmem>>, %arg1: memref<8x128xf32, #tpu.memory_space<vmem>>) attributes {dimension_semantics = [], scalar_prefetch = 0 : i64, scratch_operands = 0 : i64, tpu.core_type = #tpu.core_type<tc>} {
    %c0 = arith.constant 0 : index
    %c0_0 = arith.constant 0 : index
    %0 = vector.load %arg0[%c0, %c0_0] : memref<8x128xf32, #tpu.memory_space<vmem>>, vector<8x128xf32>
    %cst = arith.constant 3.000000e+00 : f32
    %1 = vector.broadcast %cst : f32 to vector<8x128xf32>
    %2 = arith.mulf %1, %0 : vector<8x128xf32>
    %3 = math.tanh %2 : vector<8x128xf32>
    %c0_1 = arith.constant 0 : index
    %c0_2 = arith.constant 0 : index
    %4 = vector.load %arg1[%c0_1, %c0_2] : memref<8x128xf32, #tpu.memory_space<vmem>>, vector<8x128xf32>
    tpu.vector_store %arg1[%c0_1, %c0_2], %3 {strides = array<i32>} : memref<8x128xf32, #tpu.memory_space<vmem>>, vector<8x128xf32>,
    return
  }
}

</mosaic_0001>

<llo_original>
// kernel: model_forward.1
$region0: #{model_forward.1}
  #allocation0 [shape = 'u32[]', space=smem, size = 0x4, offset = 0x4, fixed_abs, tag = 'smem constant byte address 0x4 - core index']
  #allocation1 [shape = 'u32[144,128]{1,0:T(1,128)}', space=vmem, size = 0x12000, scoped, tag = 'internal scratch']
  %s0 = inlined_call_operand.vmem [shape: f32[8,128], index: 0, kind: input, shape index: {}, may-alias: {0,1}]
  %s1 = inlined_call_operand.vmem [shape: f32[8,128], index: 1, kind: output, shape index: {}, may-alias: {0,1}]
  %s2 = sld [smem:[#allocation0]]
  $region14: #{model_forward.1} parent=0
    _
  %s4 = ssub.s32 1, %s2
  %s5 = scalar_select 0, %s4, %s2
  // Predicated region
  $region2: #{model_forward.1} parent=0 // pred_check
    _
  $region3: #{model_forward.1} parent=0 // pred_check_branch
    %7 = sbr.rel (0) target = $region5
  $region4: #{model_forward.1} parent=0 // pred_region
    _
  $region5: #{model_forward.1} parent=0 // pred_fallthru
    _
  %v8 = vld [vmem:[%s0] sm:$0xff]
  %v9 = vmul.f32 %v8, 3.0
  %v10 = vtanh.pop %v9
  %11 = vst [vmem:[%s1] sm:$0xff] %v10
  // Predicated region
  $region6: #{model_forward.1} parent=0 // pred_check
    _
  $region7: #{model_forward.1} parent=0 // pred_check_branch
    %13 = sbr.rel (0) target = $region9
  $region8: #{model_forward.1} parent=0 // pred_region
    _
  $region9: #{model_forward.1} parent=0 // pred_fallthru
    _
  // Predicated region
  $region10: #{model_forward.1} parent=0 // pred_check
    _
  $region11: #{model_forward.1} parent=0 // pred_check_branch
    %15 = sbr.rel (0) target = $region13
  $region12: #{model_forward.1} parent=0 // pred_region
    _
  $region13: #{model_forward.1} parent=0 // pred_fallthru
    _

</llo_original>
